<compile_context>
chip_gen: v6e
topology: v6e:2x2x1
jax: 0.10.0
libtpu: 0.0.40
codegen_flags: <defaults>
</compile_context>

<pallas_src>
import functools
import math

import jax
import jax.numpy as jnp
import numpy as np
from jax.experimental import pallas as pl
from jax.experimental.pallas import tpu as pltpu


def _sinusoidal_kernel(t_ref, f_ref, m_ref, o_ref, *, k):
    # t_ref: (tb, k)      f32  packed timesteps (k batch rows per packed row)
    # f_ref: (k, k*dim)   f32  row j carries freqs_full in lane block j, 0 elsewhere
    # m_ref: (1, k*dim)   f32  1.0 on sin lanes, 0.0 on cos lanes (per dim block)
    # o_ref: (tb, k*dim)  f32  packed output tile (single full-width store)
    t = t_ref[...]
    # Exact expansion: args[r, j*dim + d] = t[r, j] * freqs_full[d]
    # (zero entries of f contribute exactly 0.0, so the sum is exact f32).
    args = t[:, 0:1] * f_ref[0:1, :]
    for j in range(1, k):
        args = args + t[:, j:j+1] * f_ref[j:j+1, :]
    o_ref[...] = jnp.where(m_ref[...] > 0.5, jnp.sin(args), jnp.cos(args))


def _round_up(x: int, m: int) -> int:
    return ((x + m - 1) // m) * m


def sinusoidal_position_embeddings(time: jax.Array,
                                   embedding_dim: int) -> jax.Array:
    """time: (B,) array -> (B, embedding_dim) float32 embeddings."""
    assert embedding_dim % 2 == 0, "embedding_dim must be even"
    assert embedding_dim >= 4, "embedding_dim >= 4 required (half_dim - 1 > 0)"

    b = time.shape[0]
    dim = embedding_dim
    half = dim // 2
    scale = math.log(10000.0) / (half - 1)

    # Frequency table; passed to the kernel as an input (not captured).
    freqs = jnp.exp(jnp.arange(half, dtype=jnp.float32) * -scale)   # (half,)
    freqs_full = jnp.concatenate([freqs, freqs])                    # (dim,)

    # Lane-dense packing: k batch rows per 128-lane output row when dim < 128.
    if dim < 128 and 128 % dim == 0:
        k = 128 // dim
    else:
        k = 1
    dim_p = k * dim

    bp = -(-b // k)                      # packed rows
    pad = bp * k - b

    t = time.astype(jnp.float32).reshape(b)
    if pad:
        t = jnp.pad(t, (0, pad))
    t_packed = t.reshape(bp, k)

    # One-hot * freqs expansion table: row j carries freqs_full in lane block j.
    onehot = np.zeros((k, dim_p), dtype=np.float32)
    for j in range(k):
        onehot[j, j * dim:(j + 1) * dim] = 1.0
    fmat = jnp.asarray(onehot) * jnp.tile(freqs_full, k)[None, :]   # (k, dim_p)

    # sin/cos selection mask (1.0 = sin lane, 0.0 = cos lane), per dim block.
    smask = np.tile(
        np.concatenate([np.ones(half, np.float32), np.zeros(half, np.float32)]),
        k).reshape(1, dim_p)
    smask = jnp.asarray(smask)

    # Batch tiling: ~8 MiB output tile (16 MiB double-buffered; fits the
    # 32 MiB VMEM limit below on every chip incl. v7x).  For large batches
    # keep >= 2 grid steps so both v7x TensorCores participate.
    tile_budget = 8 * 1024 * 1024
    tb_max = max(8, (tile_budget // (dim_p * 4)) // 8 * 8)
    if bp <= 8:
        tb = bp                                    # single whole-array block
    else:
        tb = min(tb_max, _round_up(-(-bp // 2), 8))
    grid = (pl.cdiv(bp, tb),)

    kernel = functools.partial(_sinusoidal_kernel, k=k)

    out_packed = pl.pallas_call(
        kernel,
        out_shape=jax.ShapeDtypeStruct((bp, dim_p), jnp.float32),
        grid=grid,
        in_specs=[
            pl.BlockSpec((tb, k), lambda i: (i, 0)),
            pl.BlockSpec((k, dim_p), lambda i: (0, 0)),
            pl.BlockSpec((1, dim_p), lambda i: (0, 0)),
        ],
        out_specs=pl.BlockSpec((tb, dim_p), lambda i: (i, 0)),
        compiler_params=pltpu.CompilerParams(
            dimension_semantics=("parallel",),
            vmem_limit_bytes=32 * 1024 * 1024),
    )(t_packed, fmat, smask)

    # Packed row r holds batch rows r*k .. r*k+k-1 contiguously along lanes,
    # so this reshape is a free row-major view; padded rows are sliced off.
    return out_packed.reshape(bp * k, dim)[:b]


def _reference(time: jax.Array, embedding_dim: int) -> jax.Array:
    half = embedding_dim // 2
    scale = math.log(10000.0) / (half - 1)
    freqs = jnp.exp(jnp.arange(half, dtype=jnp.float32) * -scale)
    args = time.astype(jnp.float32)[:, None] * freqs[None, :]
    return jnp.concatenate([jnp.sin(args), jnp.cos(args)], axis=-1)


if __name__ == "__main__":
    key = jax.random.PRNGKey(0)
    B, DIM = 8, 32  # small shapes consistent with DDPM timestep embeddings

    # Deterministic integer "timesteps" like DDPM uses (0 .. 999).
    time = jax.random.randint(key, (B,), 0, 1000).astype(jnp.float32)

    out = sinusoidal_position_embeddings(time, DIM)
    out = jax.block_until_ready(out)

    ref = _reference(time, DIM)
    assert out.shape == (B, DIM), out.shape
    assert out.dtype == jnp.float32, out.dtype
    assert jnp.allclose(out, ref, atol=1e-4, rtol=1e-4), "mismatch vs reference"

    # Extra check: batch not a multiple of the packing factor / tile rows
    # (exercises padding + the partial last grid block).
    B2 = 50
    time2 = jax.random.randint(jax.random.PRNGKey(1), (B2,), 0, 1000)
    time2 = time2.astype(jnp.float32)
    out2 = jax.block_until_ready(sinusoidal_position_embeddings(time2, DIM))
    ref2 = _reference(time2, DIM)
    assert out2.shape == (B2, DIM), out2.shape
    assert jnp.allclose(out2, ref2, atol=1e-4, rtol=1e-4), "mismatch (ragged B)"

    print("KERNEL_OK")
</pallas_src>

<mosaic_0001>
module attributes {stable_mosaic.version = 11 : i64} {
  func.func @_sinusoidal_kernel(%arg0: i32, %arg1: memref<2x4xf32, #tpu.memory_space<vmem>>, %arg2: memref<4x128xf32, #tpu.memory_space<vmem>>, %arg3: memref<1x128xf32, #tpu.memory_space<vmem>>, %arg4: memref<2x128xf32, #tpu.memory_space<vmem>>) attributes {dimension_semantics = [#tpu.dimension_semantics<parallel>], iteration_bounds = array<i64: 1>, scalar_prefetch = 0 : i64, scratch_operands = 0 : i64, tpu.core_type = #tpu.core_type<tc>, window_params = [{transform_indices = @transform_0, window_bounds = array<i64: 2, 4>}, {pipeline_mode = #tpu.pipeline_mode<synchronous>, transform_indices = @transform_1, window_bounds = array<i64: 4, 128>}, {pipeline_mode = #tpu.pipeline_mode<synchronous>, transform_indices = @transform_2, window_bounds = array<i64: 1, 128>}, {transform_indices = @transform_3, window_bounds = array<i64: 2, 128>}]} {
    %c0 = arith.constant 0 : index
    %c0_0 = arith.constant 0 : index
    %0 = vector.load %arg1[%c0, %c0_0] : memref<2x4xf32, #tpu.memory_space<vmem>>, vector<2x4xf32>
    %1 = vector.extract_strided_slice %0 {offsets = [0, 0], sizes = [2, 1], strides = [1, 1]} : vector<2x4xf32> to vector<2x1xf32>
    %c0_1 = arith.constant 0 : index
    %c0_2 = arith.constant 0 : index
    %2 = vector.load %arg2[%c0_1, %c0_2] : memref<4x128xf32, #tpu.memory_space<vmem>>, vector<1x128xf32>
    %3 = vector.broadcast %1 : vector<2x1xf32> to vector<2x128xf32>
    %4 = vector.broadcast %2 : vector<1x128xf32> to vector<2x128xf32>
    %5 = arith.mulf %3, %4 : vector<2x128xf32>
    %6 = vector.extract_strided_slice %0 {offsets = [0, 1], sizes = [2, 1], strides = [1, 1]} : vector<2x4xf32> to vector<2x1xf32>
    %c1 = arith.constant 1 : index
    %c0_3 = arith.constant 0 : index
    %7 = vector.load %arg2[%c1, %c0_3] : memref<4x128xf32, #tpu.memory_space<vmem>>, vector<1x128xf32>
    %8 = vector.broadcast %6 : vector<2x1xf32> to vector<2x128xf32>
    %9 = vector.broadcast %7 : vector<1x128xf32> to vector<2x128xf32>
    %10 = arith.mulf %8, %9 : vector<2x128xf32>
    %11 = arith.addf %5, %10 : vector<2x128xf32>
    %12 = vector.extract_strided_slice %0 {offsets = [0, 2], sizes = [2, 1], strides = [1, 1]} : vector<2x4xf32> to vector<2x1xf32>
    %c2 = arith.constant 2 : index
    %c0_4 = arith.constant 0 : index
    %13 = vector.load %arg2[%c2, %c0_4] : memref<4x128xf32, #tpu.memory_space<vmem>>, vector<1x128xf32>
    %14 = vector.broadcast %12 : vector<2x1xf32> to vector<2x128xf32>
    %15 = vector.broadcast %13 : vector<1x128xf32> to vector<2x128xf32>
    %16 = arith.mulf %14, %15 : vector<2x128xf32>
    %17 = arith.addf %11, %16 : vector<2x128xf32>
    %18 = vector.extract_strided_slice %0 {offsets = [0, 3], sizes = [2, 1], strides = [1, 1]} : vector<2x4xf32> to vector<2x1xf32>
    %c3 = arith.constant 3 : index
    %c0_5 = arith.constant 0 : index
    %19 = vector.load %arg2[%c3, %c0_5] : memref<4x128xf32, #tpu.memory_space<vmem>>, vector<1x128xf32>
    %20 = vector.broadcast %18 : vector<2x1xf32> to vector<2x128xf32>
    %21 = vector.broadcast %19 : vector<1x128xf32> to vector<2x128xf32>
    %22 = arith.mulf %20, %21 : vector<2x128xf32>
    %23 = arith.addf %17, %22 : vector<2x128xf32>
    %c0_6 = arith.constant 0 : index
    %c0_7 = arith.constant 0 : index
    %24 = vector.load %arg3[%c0_6, %c0_7] : memref<1x128xf32, #tpu.memory_space<vmem>>, vector<1x128xf32>
    %cst = arith.constant 5.000000e-01 : f32
    %25 = vector.broadcast %cst : f32 to vector<1x128xf32>
    %26 = arith.cmpf ogt, %24, %25 : vector<1x128xf32>
    %27 = math.sin %23 : vector<2x128xf32>
    %28 = math.cos %23 : vector<2x128xf32>
    %29 = vector.shape_cast %26 : vector<1x128xi1> to vector<1x128xi1>
    %30 = vector.broadcast %29 : vector<1x128xi1> to vector<2x128xi1>
    %31 = arith.select %30, %27, %28 : vector<2x128xi1>, vector<2x128xf32>
    %c0_8 = arith.constant 0 : index
    %c0_9 = arith.constant 0 : index
    %32 = vector.load %arg4[%c0_8, %c0_9] : memref<2x128xf32, #tpu.memory_space<vmem>>, vector<2x128xf32>
    tpu.vector_store %arg4[%c0_8, %c0_9], %31 {strides = array<i32>} : memref<2x128xf32, #tpu.memory_space<vmem>>, vector<2x128xf32>,
    return
  }
  func.func @transform_0(%arg0: i32) -> (i32, i32) {
    %c0_i32 = arith.constant 0 : i32
    %c0_i32_0 = arith.constant 0 : i32
    return %arg0, %c0_i32 : i32, i32
  }
  func.func @transform_1(%arg0: i32) -> (i32, i32) {
    %c0_i32 = arith.constant 0 : i32
    %c0_i32_0 = arith.constant 0 : i32
    %c0_i32_1 = arith.constant 0 : i32
    return %c0_i32, %c0_i32_0 : i32, i32
  }
  func.func @transform_2(%arg0: i32) -> (i32, i32) {
    %c0_i32 = arith.constant 0 : i32
    %c0_i32_0 = arith.constant 0 : i32
    %c0_i32_1 = arith.constant 0 : i32
    return %c0_i32, %c0_i32_0 : i32, i32
  }
  func.func @transform_3(%arg0: i32) -> (i32, i32) {
    %c0_i32 = arith.constant 0 : i32
    %c0_i32_0 = arith.constant 0 : i32
    return %arg0, %c0_i32 : i32, i32
  }
}

</mosaic_0001>

<llo_original>
// kernel: tpu_custom_call.1
$region0: #{tpu_custom_call.1}
  #allocation0 [shape = 'u32[]', space=smem, size = 0x4, offset = 0x4, fixed_abs, tag = 'smem constant byte address 0x4 - core index']
  #allocation1 [shape = 'u32[144,128]{1,0:T(1,128)}', space=vmem, size = 0x12000, scoped, tag = 'internal scratch']
  %s0 = inlined_call_operand.hbm [shape: f32[2,4], index: 0, kind: input, shape index: {}]
  %s1 = inlined_call_operand.hbm [shape: f32[4,128], index: 1, kind: input, shape index: {}]
  %s2 = inlined_call_operand.vmem [shape: f32[1,128], index: 2, kind: input, shape index: {}]
  %s3 = inlined_call_operand.hbm [shape: f32[2,128], index: 3, kind: output, shape index: {}]
  %s4 = sld [smem:[#allocation0]]
  $region30: #{tpu_custom_call.1} parent=0
    _
  %s6 = ssub.s32 1, %s4
  %s7 = scalar_select 0, %s6, %s4
  $region1: #{tpu_custom_call.1} parent=0
    #allocation2 [shape = 'u8[1024]{0}', space=vmem, size = 0x400, scoped, tag = 'input window, operand 0, single buffered']
    #allocation3 [shape = 's32[1]{0}', space=sflag, size = 0x4, scoped, tag = 'scoped memory for tpu_custom_call.1']
    #allocation4 [shape = 's32[1]{0}', space=sflag, size = 0x4, scoped, tag = 'scoped memory for tpu_custom_call.1']
    #allocation5 [shape = 'u8[2048]{0}', space=vmem, size = 0x800, scoped, tag = 'input window, operand 1, single buffered']
    #allocation6 [shape = 's32[1]{0}', space=sflag, size = 0x4, scoped, tag = 'scoped memory for tpu_custom_call.1']
    #allocation7 [shape = 'u8[1024]{0}', space=vmem, size = 0x400, scoped, tag = 'output window, operand 0, single buffered']
    %8 = vsyncpa [#allocation3], 0
    %9 = vsyncpa [#allocation6], 0
    %10 = vsyncpa [#allocation4], 0
    // Predicated region
    $region2: #{tpu_custom_call.1} parent=1 // pred_check
      _
    $region3: #{tpu_custom_call.1} parent=1 // pred_check_branch
      %12 = sbr.rel (0) target = $region5
    $region4: #{tpu_custom_call.1} parent=1 // pred_region
      %s14 = ssub.s32 32, 32
      %15 = vsyncadd [#allocation3], %s14
      %s17 = sshll.u32 [#allocation2], 4
      %s18 = int_to_ptr.vmem [resolvable:$true] %s17
      %20 = dma.hbm_to_vmem [thread:$0]  %s0, 32, %s18, [#allocation3]
    $region5: #{tpu_custom_call.1} parent=1 // pred_fallthru
      _
    // Predicated region
    $region6: #{tpu_custom_call.1} parent=1 // pred_check
      _
    $region7: #{tpu_custom_call.1} parent=1 // pred_check_branch
      %22 = sbr.rel (0) target = $region9
    $region8: #{tpu_custom_call.1} parent=1 // pred_region
      %s24 = ssub.s32 64, 64
      %25 = vsyncadd [#allocation6], %s24
      %s27 = sshll.u32 [#allocation5], 4
      %s28 = int_to_ptr.vmem [resolvable:$true] %s27
      %30 = dma.hbm_to_vmem [thread:$0]  %s1, 64, %s28, [#allocation6]
    $region9: #{tpu_custom_call.1} parent=1 // pred_fallthru
      _
    // Predicated region
    $region10: #{tpu_custom_call.1} parent=1 // pred_check
      _
    $region11: #{tpu_custom_call.1} parent=1 // pred_check_branch
      %32 = sbr.rel (0) target = $region13
    $region12: #{tpu_custom_call.1} parent=1 // pred_region
      _
    $region13: #{tpu_custom_call.1} parent=1 // pred_fallthru
      _
    // Predicated region
    $region14: #{tpu_custom_call.1} parent=1 // pred_check
      _
    $region15: #{tpu_custom_call.1} parent=1 // pred_check_branch
      %34 = sbr.rel (0) target = $region17
    $region16: #{tpu_custom_call.1} parent=1 // pred_region
      %35 = dma.done [#allocation3], 32
    $region17: #{tpu_custom_call.1} parent=1 // pred_fallthru
      _
    // Predicated region
    $region18: #{tpu_custom_call.1} parent=1 // pred_check
      _
    $region19: #{tpu_custom_call.1} parent=1 // pred_check_branch
      %37 = sbr.rel (0) target = $region21
    $region20: #{tpu_custom_call.1} parent=1 // pred_region
      %38 = dma.done [#allocation6], 64
    $region21: #{tpu_custom_call.1} parent=1 // pred_fallthru
      _
    %v39 = vld [vmem:[#allocation2] sm:$0x3]
    %v40 = vld [vmem:[#allocation5] sm:$0x1]
    %42 = vset.pattern.permute.xlu0 0
    %43 = vperm.xlu0 %42, %v39
    %v44 = vpop.permute.xlu0 %43
    %v46 = vlaneseq
    %v47 = vshrl.u32 %v46, 7
    %v48 = vsub.s32 0, %v47
    %v49 = vrot.slane %v40, %v48
    %v50 = vmul.f32 %v44, %v49
    %v51 = vld [vmem:[#allocation5 + $0x1] sm:$0x1]
    %52 = vset.pattern.permute.xlu0 1
    %53 = vperm.xlu0 %52, %v39
    %v54 = vpop.permute.xlu0 %53
    %v56 = vlaneseq
    %v57 = vshrl.u32 %v56, 7
    %v58 = vsub.s32 0, %v57
    %v59 = vrot.slane %v51, %v58
    %v60 = vmul.f32 %v54, %v59
    %v61 = vadd.f32 %v50, %v60
    %v62 = vld [vmem:[#allocation5 + $0x2] sm:$0x1]
    %63 = vset.pattern.permute.xlu0 2
    %64 = vperm.xlu0 %63, %v39
    %v65 = vpop.permute.xlu0 %64
    %v67 = vlaneseq
    %v68 = vshrl.u32 %v67, 7
    %v69 = vsub.s32 0, %v68
    %v70 = vrot.slane %v62, %v69
    %v71 = vmul.f32 %v65, %v70
    %v72 = vadd.f32 %v61, %v71
    %v73 = vld [vmem:[#allocation5 + $0x3] sm:$0x1]
    %74 = vset.pattern.permute.xlu0 3
    %75 = vperm.xlu0 %74, %v39
    %v76 = vpop.permute.xlu0 %75
    %v78 = vlaneseq
    %v79 = vshrl.u32 %v78, 7
    %v80 = vsub.s32 0, %v79
    %v81 = vrot.slane %v73, %v80
    %v82 = vmul.f32 %v76, %v81
    %v83 = vadd.f32 %v72, %v82
    %v84 = vld [vmem:[%s2] sm:$0x1]
    %vm85 = vcmp.gt.f32.partialorder %v84, 0.5
    %v86 = vand.u32 2147483647, %v83
    %vm87 = vcmp.le.f32.partialorder %v86, 0.7853982
    %vm88 = vcmp.lt.s32.totalorder %v83, 0
    %v89 = vand.u32 %v83, 2139095040
    %v90 = vshrl.u32 %v89, 23
    %v91 = vsub.s32 %v90, 127
    %v92 = vand.u32 2147483647, %v83
    %v93 = vand.u32 %v92, 8388607
    %v94 = vor.u32 %v93, 8388608
    %v95 = vsub.s32 0, %v94
    %v96 = vadd.s32 %v91, 1
    %vm97 = vcmp.gt.s32.totalorder %v96, 0
    %v98 = vsel %vm97, %v96, 0
    %v99 = vshrl.u32 %v98, 5
    %v100 = vand.u32 %v98, 31
    %v101 = vsub.s32 32, %v100
    %v102 = vshrl.u32 683565275, %v101
    %v103 = vshll.u32 683565275, %v100
    %v104 = vshrl.u32 2475754826, %v101
    %v105 = vor.u32 %v103, %v104
    %v106 = vshll.u32 2475754826, %v100
    %v107 = vshrl.u32 2131351028, %v101
    %v108 = vor.u32 %v106, %v107
    %v109 = vshll.u32 2131351028, %v100
    %v110 = vshrl.u32 2102212464, %v101
    %v111 = vor.u32 %v109, %v110
    %v112 = vshll.u32 2102212464, %v100
    %v113 = vshrl.u32 920167782, %v101
    %v114 = vor.u32 %v112, %v113
    %v115 = vshll.u32 920167782, %v100
    %v116 = vshrl.u32 1326507024, %v101
    %v117 = vor.u32 %v115, %v116
    %vm118 = vcmp.lt.s32.totalorder %v99, 1
    %vm119 = vcmp.lt.s32.totalorder %v99, 2
    %vm120 = vcmp.lt.s32.totalorder %v99, 3
    %vm121 = vcmp.lt.s32.totalorder %v99, 4
    %v122 = vsel %vm118, %v102, %v105
    %v123 = vsel %vm121, %v111, 2102212464
    %v124 = vsel %vm120, %v108, %v123
    %v125 = vsel %vm119, %v122, %v124
    %v126 = vsel %vm118, %v105, %v108
    %v127 = vsel %vm121, %v114, 920167782
    %v128 = vsel %vm120, %v111, %v127
    %v129 = vsel %vm119, %v126, %v128
    %v130 = vsel %vm118, %v108, %v111
    %v131 = vsel %vm121, %v117, 1326507024
    %v132 = vsel %vm120, %v114, %v131
    %v133 = vsel %vm119, %v130, %v132
    %v134 = vshll.u32 %v94, 8
    %v135 = vmul.u32.u64.compose %v134, %v133
    %v136 = vextract.low.u32 %v135
    %v137 = vextract.high.u32 %v135
    %v138 = vmul.u32.u64.compose %v134, %v129
    %v139 = vextract.low.u32 %v138
    %v140 = vextract.high.u32 %v138
    %v141 = vmul.u32 %v134, %v125
    %v142 = vadd.s32 %v137, %v139
    %vm143 = vc.u32 %v137, %v139
    %v144 = vadd.s32 %v140, 1
    %v145 = vsel %vm143, %v144, %v140
    %v146 = vadd.s32 %v141, %v145
    %v147 = vadd.s32 %v146, 536870912
    %v148 = vshrl.u32 %v147, 30
    %v149 = vshll.u32 %v148, 30
    %v150 = vsub.s32 %v146, %v149
    %vm151 = vcmp.lt.s32.totalorder %v150, 0
    %v152 = vsub.s32 0, %v150
    %v153 = vsel %vm151, %v152, %v150
    %v154 = vclz %v153
    %v155 = vsub.s32 %v154, 2
    %vm156 = vcmp.gt.s32.totalorder 0, %v155
    %v157 = vsel %vm156, 0, %v155
    %v158 = vsub.s32 32, %v157
    %v159 = vshll.u32 %v150, %v157
    %v160 = vshrl.u32 %v142, %v158
    %v161 = vor.u32 %v159, %v160
    %v162 = vsub.s32 4294967266, %v157
    %v163 = vadd.s32 %v162, 127
    %v164 = vshll.u32 %v163, 23
    %v165 = vor.u32 4788187, %v164
    %v166 = vand.u32 2147483647, %v165
    %v168 = vcvt.s32.f32 %v161
    %v169 = vmul.f32 %v168, %v166
    %v170 = vxor.u32 %v169, 2147483648
    %v171 = vsel %vm88, %v170, %v169
    %v172 = vsub.s32 4, %v148
    %v173 = vsel %vm88, %v172, %v148
    %v174 = vsel %vm87, %v83, %v171
    %v175 = vsel %vm87, 0, %v173
    %v176 = vcosq.f32.pop %v174
    %v177 = vsinq.f32.pop %v174
    %vm178 = vweird.f32 %v83
    %v179 = vadd.s32 %v175, 3
    %v180 = vand.u32 %v179, 3
    %vm181 = vcmp.lt.s32.totalorder %v180, 2
    %vm182 = vcmp.eq.s32.totalorder %v180, 0
    %v183 = vxor.u32 %v177, 2147483648
    %v184 = vsel %vm182, %v176, %v183
    %vm185 = vcmp.eq.s32.totalorder %v180, 2
    %v186 = vxor.u32 %v176, 2147483648
    %v187 = vsel %vm185, %v186, %v177
    %v188 = vsel %vm181, %v184, %v187
    %v189 = vsel %vm178, nan, %v188
    %v190 = vand.u32 2147483647, %v83
    %vm191 = vcmp.le.f32.partialorder %v190, 0.7853982
    %vm192 = vcmp.lt.s32.totalorder %v83, 0
    %v193 = vand.u32 %v83, 2139095040
    %v194 = vshrl.u32 %v193, 23
    %v195 = vsub.s32 %v194, 127
    %v196 = vand.u32 2147483647, %v83
    %v197 = vand.u32 %v196, 8388607
    %v198 = vor.u32 %v197, 8388608
    %v199 = vsub.s32 0, %v198
    %v200 = vadd.s32 %v195, 1
    %vm201 = vcmp.gt.s32.totalorder %v200, 0
    %v202 = vsel %vm201, %v200, 0
    %v203 = vshrl.u32 %v202, 5
    %v204 = vand.u32 %v202, 31
    %v205 = vsub.s32 32, %v204
    %v206 = vshrl.u32 683565275, %v205
    %v207 = vshll.u32 683565275, %v204
    %v208 = vshrl.u32 2475754826, %v205
    %v209 = vor.u32 %v207, %v208
    %v210 = vshll.u32 2475754826, %v204
    %v211 = vshrl.u32 2131351028, %v205
    %v212 = vor.u32 %v210, %v211
    %v213 = vshll.u32 2131351028, %v204
    %v214 = vshrl.u32 2102212464, %v205
    %v215 = vor.u32 %v213, %v214
    %v216 = vshll.u32 2102212464, %v204
    %v217 = vshrl.u32 920167782, %v205
    %v218 = vor.u32 %v216, %v217
    %v219 = vshll.u32 920167782, %v204
    %v220 = vshrl.u32 1326507024, %v205
    %v221 = vor.u32 %v219, %v220
    %vm222 = vcmp.lt.s32.totalorder %v203, 1
    %vm223 = vcmp.lt.s32.totalorder %v203, 2
    %vm224 = vcmp.lt.s32.totalorder %v203, 3
    %vm225 = vcmp.lt.s32.totalorder %v203, 4
    %v226 = vsel %vm222, %v206, %v209
    %v227 = vsel %vm225, %v215, 2102212464
    %v228 = vsel %vm224, %v212, %v227
    %v229 = vsel %vm223, %v226, %v228
    %v230 = vsel %vm222, %v209, %v212
    %v231 = vsel %vm225, %v218, 920167782
    %v232 = vsel %vm224, %v215, %v231
    %v233 = vsel %vm223, %v230, %v232
    %v234 = vsel %vm222, %v212, %v215
    %v235 = vsel %vm225, %v221, 1326507024
    %v236 = vsel %vm224, %v218, %v235
    %v237 = vsel %vm223, %v234, %v236
    %v238 = vshll.u32 %v198, 8
    %v239 = vmul.u32.u64.compose %v238, %v237
    %v240 = vextract.low.u32 %v239
    %v241 = vextract.high.u32 %v239
    %v242 = vmul.u32.u64.compose %v238, %v233
    %v243 = vextract.low.u32 %v242
    %v244 = vextract.high.u32 %v242
    %v245 = vmul.u32 %v238, %v229
    %v246 = vadd.s32 %v241, %v243
    %vm247 = vc.u32 %v241, %v243
    %v248 = vadd.s32 %v244, 1
    %v249 = vsel %vm247, %v248, %v244
    %v250 = vadd.s32 %v245, %v249
    %v251 = vadd.s32 %v250, 536870912
    %v252 = vshrl.u32 %v251, 30
    %v253 = vshll.u32 %v252, 30
    %v254 = vsub.s32 %v250, %v253
    %vm255 = vcmp.lt.s32.totalorder %v254, 0
    %v256 = vsub.s32 0, %v254
    %v257 = vsel %vm255, %v256, %v254
    %v258 = vclz %v257
    %v259 = vsub.s32 %v258, 2
    %vm260 = vcmp.gt.s32.totalorder 0, %v259
    %v261 = vsel %vm260, 0, %v259
    %v262 = vsub.s32 32, %v261
    %v263 = vshll.u32 %v254, %v261
    %v264 = vshrl.u32 %v246, %v262
    %v265 = vor.u32 %v263, %v264
    %v266 = vsub.s32 4294967266, %v261
    %v267 = vadd.s32 %v266, 127
    %v268 = vshll.u32 %v267, 23
    %v269 = vor.u32 4788187, %v268
    %v270 = vand.u32 2147483647, %v269
    %v272 = vcvt.s32.f32 %v265
    %v273 = vmul.f32 %v272, %v270
    %v274 = vxor.u32 %v273, 2147483648
    %v275 = vsel %vm192, %v274, %v273
    %v276 = vsub.s32 4, %v252
    %v277 = vsel %vm192, %v276, %v252
    %v278 = vsel %vm191, %v83, %v275
    %v279 = vsel %vm191, 0, %v277
    %v280 = vcosq.f32.pop %v278
    %v281 = vsinq.f32.pop %v278
    %vm282 = vweird.f32 %v83
    %v283 = vand.u32 %v279, 3
    %vm284 = vcmp.lt.s32.totalorder %v283, 2
    %vm285 = vcmp.eq.s32.totalorder %v283, 0
    %v286 = vxor.u32 %v281, 2147483648
    %v287 = vsel %vm285, %v280, %v286
    %vm288 = vcmp.eq.s32.totalorder %v283, 2
    %v289 = vxor.u32 %v280, 2147483648
    %v290 = vsel %vm288, %v289, %v281
    %v291 = vsel %vm284, %v287, %v290
    %v292 = vsel %vm282, nan, %v291
    %v293 = vsel %vm85, 1, 0
    %v294 = vlaneseq
    %v295 = vshrl.u32 %v294, 7
    %v296 = vsub.s32 0, %v295
    %v297 = vrot.slane %v293, %v296
    %vm298 = vcmp.eq.s32.totalorder %v297, 1
    %v299 = vsel %vm298, %v189, %v292
    %300 = vst [vmem:[#allocation7] sm:$0x3] %v299
    // Predicated region
    $region22: #{tpu_custom_call.1} parent=1 // pred_check
      _
    $region23: #{tpu_custom_call.1} parent=1 // pred_check_branch
      %302 = sbr.rel (0) target = $region25
    $region24: #{tpu_custom_call.1} parent=1 // pred_region
      %s304 = ssub.s32 32, 32
      %305 = vsyncadd [#allocation4], %s304
      %s307 = sshll.u32 [#allocation7], 4
      %s308 = int_to_ptr.vmem [resolvable:$true] %s307
      %310 = dma.vmem_to_hbm [thread:$0]  %s308, 32, %s3, [#allocation4]
    $region25: #{tpu_custom_call.1} parent=1 // pred_fallthru
      _
    // Predicated region
    $region26: #{tpu_custom_call.1} parent=1 // pred_check
      _
    $region27: #{tpu_custom_call.1} parent=1 // pred_check_branch
      %312 = sbr.rel (0) target = $region29
    $region28: #{tpu_custom_call.1} parent=1 // pred_region
      %313 = dma.done [#allocation4], 32
    $region29: #{tpu_custom_call.1} parent=1 // pred_fallthru
      _
    %314 = vsyncpa [#allocation3], 1
    %315 = vsyncpa [#allocation6], 1
    %316 = vsyncpa [#allocation4], 1

</llo_original>
